<compile_context>
chip_gen: v6e
topology: v6e:2x2x1
jax: 0.10.0
libtpu: 0.0.40
codegen_flags: <defaults>
</compile_context>

<pallas_src>
import functools

import jax
import jax.numpy as jnp
from jax.experimental import pallas as pl
from jax.experimental.pallas import tpu as pltpu


# ----------------------------- Pallas kernel --------------------------------
def _loss_kernel(fy_ref, fh_ref, whi_ref, wlo_ref, out_ref, *,
                 half_exp, inv_norm, roll_shift):
    t = pl.program_id(1)

    @pl.when(t == 0)
    def _init():
        out_ref[...] = jnp.zeros_like(out_ref)

    w_hi = whi_ref[...]                                   # (n_fft, L) bf16
    w_lo = wlo_ref[...]                                   # (n_fft, L) bf16

    def compress(frames):                                 # (FT, n_fft) f32
        # bf16 hi/lo split: 3 single-pass bf16 matmuls ~= f32 accuracy.
        f_hi = frames.astype(jnp.bfloat16)
        f_lo = (frames - f_hi.astype(jnp.float32)).astype(jnp.bfloat16)
        s = (jnp.dot(f_hi, w_hi, preferred_element_type=jnp.float32)
             + jnp.dot(f_lo, w_hi, preferred_element_type=jnp.float32)
             + jnp.dot(f_hi, w_lo, preferred_element_type=jnp.float32))
        # lanes [0:nfreq) hold Re, lanes [roll_shift:roll_shift+nfreq) hold Im;
        # swapping the halves lines Im up with Re (and vice versa).
        s_sw = pltpu.roll(s, shift=roll_shift, axis=1)
        mag2 = s * s + s_sw * s_sw                        # |Y|^2 in both halves
        scale = jnp.exp(half_exp * jnp.log(mag2 + 1e-18)) # (|Y|^2+eps)^((c-1)/2)
        return s * scale                                  # compressed spectrum

    diff = compress(fy_ref[0]) - compress(fh_ref[0])      # (FT, L)
    tile_sum = jnp.sum(diff * diff, axis=0, keepdims=True)  # (1, L)
    out_ref[...] += tile_sum[None]                        # (1, 1, L) accumulator

    @pl.when(t == pl.num_programs(1) - 1)
    def _finalize():
        total = jnp.sum(out_ref[...], axis=2, keepdims=True)   # (1, 1, 1)
        out_ref[...] = jnp.broadcast_to(total * inv_norm, out_ref.shape)


# ------------------------------ JAX glue -------------------------------------
def _round_up(x, m):
    return (x + m - 1) // m * m


def _hann_window(n_fft):
    # torch.hann_window default is periodic=True
    i = jnp.arange(n_fft, dtype=jnp.float32)
    return 0.5 - 0.5 * jnp.cos(2.0 * jnp.pi * i / n_fft)


def _dft_basis_packed(n_fft):
    """Windowed DFT basis with Re in lanes [0:nfreq) and Im in [half:half+nfreq)."""
    n_freq = n_fft // 2 + 1
    half = 64 if n_freq <= 64 else _round_up(n_freq, 128)
    n = jnp.arange(n_fft, dtype=jnp.float32)[:, None]
    k = jnp.arange(n_freq, dtype=jnp.float32)[None, :]
    ang = 2.0 * jnp.pi * n * k / n_fft
    w = _hann_window(n_fft)[:, None]
    wr = w * jnp.cos(ang)
    wi = -(w * jnp.sin(ang))
    basis = jnp.zeros((n_fft, 2 * half), jnp.float32)
    basis = basis.at[:, :n_freq].set(wr)
    basis = basis.at[:, half:half + n_freq].set(wi)
    return basis, half


def _frame_signal(x, n_fft, hop):
    """(B, T) -> (B, n_frames, n_fft); center=True reflect pad, no gather HLO."""
    pad = n_fft // 2
    xp = jnp.pad(x, ((0, 0), (pad, pad)), mode="reflect")
    total = xp.shape[-1]
    n_frames = 1 + (total - n_fft) // hop
    if n_fft % hop == 0:
        r = n_fft // hop
        n_chunks = total // hop
        ch = xp[:, : n_chunks * hop].reshape(x.shape[0], n_chunks, hop)
        frames = jnp.concatenate(
            [ch[:, j:j + n_frames, :] for j in range(r)], axis=-1)
    else:
        # TODO(synk): hop not dividing n_fft falls back to a gather-based framing.
        idx = jnp.arange(n_frames)[:, None] * hop + jnp.arange(n_fft)[None, :]
        frames = xp[:, idx]
    return frames


@functools.partial(jax.jit, static_argnames=("n_fft", "hop", "c", "frames_per_tile"))
def loss_vae_reconstruction(y, y_hat, *, n_fft=64, hop=16, c=0.3,
                            frames_per_tile=1024):
    """y, y_hat: (B, T) float32 -> (B,) float32."""
    y = y.astype(jnp.float32)
    y_hat = y_hat.astype(jnp.float32)
    bs = y.shape[0]
    n_freq = n_fft // 2 + 1

    fy = _frame_signal(y, n_fft, hop)          # (B, F, n_fft)
    fh = _frame_signal(y_hat, n_fft, hop)
    n_frames = fy.shape[1]

    ft = min(frames_per_tile, _round_up(n_frames, 8))
    f_pad = _round_up(n_frames, ft)
    if f_pad != n_frames:
        padcfg = ((0, 0), (0, f_pad - n_frames), (0, 0))
        fy = jnp.pad(fy, padcfg)               # zero frames contribute 0 to the sum
        fh = jnp.pad(fh, padcfg)

    basis, half = _dft_basis_packed(n_fft)
    lanes = 2 * half
    w_hi = basis.astype(jnp.bfloat16)
    w_lo = (basis - w_hi.astype(jnp.float32)).astype(jnp.bfloat16)

    kernel = functools.partial(
        _loss_kernel,
        half_exp=0.5 * (c - 1.0),
        inv_norm=1.0 / float(n_frames * n_freq),   # divide by TRUE F * n_freq
        roll_shift=half,
    )

    out = pl.pallas_call(
        kernel,
        out_shape=jax.ShapeDtypeStruct((bs, 1, lanes), jnp.float32),
        grid_spec=pltpu.PrefetchScalarGridSpec(
            num_scalar_prefetch=0,
            grid=(bs, f_pad // ft),
            in_specs=[
                pl.BlockSpec((1, ft, n_fft), lambda b, t: (b, t, 0)),
                pl.BlockSpec((1, ft, n_fft), lambda b, t: (b, t, 0)),
                pl.BlockSpec((n_fft, lanes), lambda b, t: (0, 0)),
                pl.BlockSpec((n_fft, lanes), lambda b, t: (0, 0)),
            ],
            out_specs=pl.BlockSpec((1, 1, lanes), lambda b, t: (b, 0, 0)),
        ),
        compiler_params=pltpu.CompilerParams(
            dimension_semantics=("parallel", "arbitrary"),
            vmem_limit_bytes=32 * 1024 * 1024,
        ),
    )(fy, fh, w_hi, w_lo)
    return out[:, 0, 0]


# ------------------------------ reference ------------------------------------
def _reference_loss(y, y_hat, *, n_fft=64, hop=16, c=0.3):
    def stft(x):
        f = _frame_signal(x.astype(jnp.float32), n_fft, hop)
        return jnp.fft.rfft(f * _hann_window(n_fft), axis=-1)   # (B, F, n_freq)

    def drc(spec):
        mag = jnp.abs(spec)
        return spec / (mag + 1e-9) * (mag ** c)

    d = drc(stft(y)) - drc(stft(y_hat))
    loss = d.real ** 2 + d.imag ** 2
    return jnp.mean(loss, axis=(1, 2))


# ------------------------------- main -----------------------------------------
if __name__ == "__main__":
    # h.reconstruction_loss_nfft=64, reconstruction_hoplength=16, c=0.3
    key = jax.random.PRNGKey(0)
    k1, k2 = jax.random.split(key)

    # Case 1: tiny signal (single frame tile).
    B, T = 2, 256
    y = jax.random.normal(k1, (B, T), dtype=jnp.float32)
    y_hat = jax.random.normal(k2, (B, T), dtype=jnp.float32)

    out = jax.block_until_ready(loss_vae_reconstruction(y, y_hat, n_fft=64, hop=16, c=0.3))
    ref = jax.block_until_ready(_reference_loss(y, y_hat, n_fft=64, hop=16, c=0.3))
    assert out.shape == (B,), out.shape
    assert bool(jnp.allclose(out, ref, rtol=1e-4, atol=1e-5)), (out, ref)

    # Case 2: longer signal -> multiple frame tiles + frame padding exercised.
    k3, k4 = jax.random.split(jax.random.PRNGKey(1))
    B2, T2 = 2, 4096
    y2 = jax.random.normal(k3, (B2, T2), dtype=jnp.float32)
    y2_hat = jax.random.normal(k4, (B2, T2), dtype=jnp.float32)

    out2 = jax.block_until_ready(
        loss_vae_reconstruction(y2, y2_hat, n_fft=64, hop=16, c=0.3, frames_per_tile=64))
    ref2 = jax.block_until_ready(_reference_loss(y2, y2_hat, n_fft=64, hop=16, c=0.3))
    assert out2.shape == (B2,), out2.shape
    assert bool(jnp.allclose(out2, ref2, rtol=1e-4, atol=1e-5)), (out2, ref2)

    print("KERNEL_OK")
</pallas_src>

<mosaic_0001>
module attributes {stable_mosaic.version = 11 : i64} {
  func.func @_loss_kernel(%arg0: i32, %arg1: i32, %arg2: memref<1x24x64xf32, #tpu.memory_space<vmem>>, %arg3: memref<1x24x64xf32, #tpu.memory_space<vmem>>, %arg4: memref<64x128xbf16, #tpu.memory_space<vmem>>, %arg5: memref<64x128xbf16, #tpu.memory_space<vmem>>, %arg6: memref<1x1x128xf32, #tpu.memory_space<vmem>>) attributes {dimension_semantics = [#tpu.dimension_semantics<parallel>, #tpu.dimension_semantics<arbitrary>], iteration_bounds = array<i64: 2, 1>, scalar_prefetch = 0 : i64, scratch_operands = 0 : i64, tpu.core_type = #tpu.core_type<tc>, window_params = [{transform_indices = @transform_0, window_bounds = array<i64: 1, 24, 64>}, {transform_indices = @transform_1, window_bounds = array<i64: 1, 24, 64>}, {pipeline_mode = #tpu.pipeline_mode<synchronous>, transform_indices = @transform_2, window_bounds = array<i64: 64, 128>}, {pipeline_mode = #tpu.pipeline_mode<synchronous>, transform_indices = @transform_3, window_bounds = array<i64: 64, 128>}, {transform_indices = @transform_4, window_bounds = array<i64: 1, 1, 128>}]} {
    %c0_i32 = arith.constant 0 : i32
    %0 = arith.cmpi eq, %arg1, %c0_i32 : i32
    %1 = arith.extui %0 : i1 to i32
    %c0_i32_0 = arith.constant 0 : i32
    %2 = arith.cmpi ne, %1, %c0_i32_0 : i32
    scf.if %2 {
      %cst_29 = arith.constant 0.000000e+00 : f32
      %60 = vector.broadcast %cst_29 : f32 to vector<1x1x128xf32>
      %c0_30 = arith.constant 0 : index
      %c0_31 = arith.constant 0 : index
      %c0_32 = arith.constant 0 : index
      %61 = vector.load %arg6[%c0_30, %c0_31, %c0_32] : memref<1x1x128xf32, #tpu.memory_space<vmem>>, vector<1x1x128xf32>
      tpu.vector_store %arg6[%c0_30, %c0_31, %c0_32], %60 {strides = array<i32>} : memref<1x1x128xf32, #tpu.memory_space<vmem>>, vector<1x1x128xf32>,
    } else {
    }
    %c0 = arith.constant 0 : index
    %c0_1 = arith.constant 0 : index
    %3 = vector.load %arg4[%c0, %c0_1] : memref<64x128xbf16, #tpu.memory_space<vmem>>, vector<64x128xbf16>
    %c0_2 = arith.constant 0 : index
    %c0_3 = arith.constant 0 : index
    %4 = vector.load %arg5[%c0_2, %c0_3] : memref<64x128xbf16, #tpu.memory_space<vmem>>, vector<64x128xbf16>
    %c0_4 = arith.constant 0 : index
    %c0_5 = arith.constant 0 : index
    %c0_6 = arith.constant 0 : index
    %5 = vector.load %arg2[%c0_4, %c0_5, %c0_6] : memref<1x24x64xf32, #tpu.memory_space<vmem>>, vector<1x24x64xf32>
    %6 = vector.shape_cast %5 : vector<1x24x64xf32> to vector<24x64xf32>
    %7 = arith.truncf %6 : vector<24x64xf32> to vector<24x64xbf16>
    %8 = arith.extf %7 : vector<24x64xbf16> to vector<24x64xf32>
    %9 = arith.subf %6, %8 : vector<24x64xf32>
    %10 = arith.truncf %9 : vector<24x64xf32> to vector<24x64xbf16>
    %cst = arith.constant dense<0.000000e+00> : vector<24x128xf32>
    %11 = tpu.matmul %7, %3, %cst {dimension_numbers = #tpu.dot_dimension_numbers<[1], [0], [0], [1], [0, 0, 1, 1], [], []>} : vector<24x64xbf16>, vector<64x128xbf16>, vector<24x128xf32> -> vector<24x128xf32>
    %cst_7 = arith.constant dense<0.000000e+00> : vector<24x128xf32>
    %12 = tpu.matmul %10, %3, %cst_7 {dimension_numbers = #tpu.dot_dimension_numbers<[1], [0], [0], [1], [0, 0, 1, 1], [], []>} : vector<24x64xbf16>, vector<64x128xbf16>, vector<24x128xf32> -> vector<24x128xf32>
    %13 = arith.addf %11, %12 : vector<24x128xf32>
    %cst_8 = arith.constant dense<0.000000e+00> : vector<24x128xf32>
    %14 = tpu.matmul %7, %4, %cst_8 {dimension_numbers = #tpu.dot_dimension_numbers<[1], [0], [0], [1], [0, 0, 1, 1], [], []>} : vector<24x64xbf16>, vector<64x128xbf16>, vector<24x128xf32> -> vector<24x128xf32>
    %15 = arith.addf %13, %14 : vector<24x128xf32>
    %c64_i32 = arith.constant 64 : i32
    %16 = tpu.dynamic_rotate %15 by %c64_i32 dim 1 : vector<24x128xf32>, i32 -> vector<24x128xf32>
    %17 = arith.mulf %15, %15 : vector<24x128xf32>
    %18 = arith.mulf %16, %16 : vector<24x128xf32>
    %19 = arith.addf %17, %18 : vector<24x128xf32>
    %cst_9 = arith.constant 1.000000e-18 : f32
    %20 = vector.broadcast %cst_9 : f32 to vector<24x128xf32>
    %21 = arith.addf %19, %20 : vector<24x128xf32>
    %22 = math.log %21 : vector<24x128xf32>
    %cst_10 = arith.constant -3.500000e-01 : f32
    %23 = vector.broadcast %cst_10 : f32 to vector<24x128xf32>
    %24 = arith.mulf %23, %22 : vector<24x128xf32>
    %25 = math.exp %24 : vector<24x128xf32>
    %26 = arith.mulf %15, %25 : vector<24x128xf32>
    %c0_11 = arith.constant 0 : index
    %c0_12 = arith.constant 0 : index
    %c0_13 = arith.constant 0 : index
    %27 = vector.load %arg3[%c0_11, %c0_12, %c0_13] : memref<1x24x64xf32, #tpu.memory_space<vmem>>, vector<1x24x64xf32>
    %28 = vector.shape_cast %27 : vector<1x24x64xf32> to vector<24x64xf32>
    %29 = arith.truncf %28 : vector<24x64xf32> to vector<24x64xbf16>
    %30 = arith.extf %29 : vector<24x64xbf16> to vector<24x64xf32>
    %31 = arith.subf %28, %30 : vector<24x64xf32>
    %32 = arith.truncf %31 : vector<24x64xf32> to vector<24x64xbf16>
    %cst_14 = arith.constant dense<0.000000e+00> : vector<24x128xf32>
    %33 = tpu.matmul %29, %3, %cst_14 {dimension_numbers = #tpu.dot_dimension_numbers<[1], [0], [0], [1], [0, 0, 1, 1], [], []>} : vector<24x64xbf16>, vector<64x128xbf16>, vector<24x128xf32> -> vector<24x128xf32>
    %cst_15 = arith.constant dense<0.000000e+00> : vector<24x128xf32>
    %34 = tpu.matmul %32, %3, %cst_15 {dimension_numbers = #tpu.dot_dimension_numbers<[1], [0], [0], [1], [0, 0, 1, 1], [], []>} : vector<24x64xbf16>, vector<64x128xbf16>, vector<24x128xf32> -> vector<24x128xf32>
    %35 = arith.addf %33, %34 : vector<24x128xf32>
    %cst_16 = arith.constant dense<0.000000e+00> : vector<24x128xf32>
    %36 = tpu.matmul %29, %4, %cst_16 {dimension_numbers = #tpu.dot_dimension_numbers<[1], [0], [0], [1], [0, 0, 1, 1], [], []>} : vector<24x64xbf16>, vector<64x128xbf16>, vector<24x128xf32> -> vector<24x128xf32>
    %37 = arith.addf %35, %36 : vector<24x128xf32>
    %c64_i32_17 = arith.constant 64 : i32
    %38 = tpu.dynamic_rotate %37 by %c64_i32_17 dim 1 : vector<24x128xf32>, i32 -> vector<24x128xf32>
    %39 = arith.mulf %37, %37 : vector<24x128xf32>
    %40 = arith.mulf %38, %38 : vector<24x128xf32>
    %41 = arith.addf %39, %40 : vector<24x128xf32>
    %cst_18 = arith.constant 1.000000e-18 : f32
    %42 = vector.broadcast %cst_18 : f32 to vector<24x128xf32>
    %43 = arith.addf %41, %42 : vector<24x128xf32>
    %44 = math.log %43 : vector<24x128xf32>
    %cst_19 = arith.constant -3.500000e-01 : f32
    %45 = vector.broadcast %cst_19 : f32 to vector<24x128xf32>
    %46 = arith.mulf %45, %44 : vector<24x128xf32>
    %47 = math.exp %46 : vector<24x128xf32>
    %48 = arith.mulf %37, %47 : vector<24x128xf32>
    %49 = arith.subf %26, %48 : vector<24x128xf32>
    %50 = arith.mulf %49, %49 : vector<24x128xf32>
    %cst_20 = arith.constant dense<0.000000e+00> : vector<128xf32>
    %51 = vector.multi_reduction <add>, %50, %cst_20 [0] : vector<24x128xf32> to vector<128xf32>
    %52 = vector.shape_cast %51 : vector<128xf32> to vector<1x128xf32>
    %c0_21 = arith.constant 0 : index
    %c0_22 = arith.constant 0 : index
    %c0_23 = arith.constant 0 : index
    %53 = vector.load %arg6[%c0_21, %c0_22, %c0_23] : memref<1x1x128xf32, #tpu.memory_space<vmem>>, vector<1x1x128xf32>
    %54 = vector.shape_cast %52 : vector<1x128xf32> to vector<1x1x128xf32>
    %55 = arith.addf %53, %54 : vector<1x1x128xf32>
    %c0_24 = arith.constant 0 : index
    %c0_25 = arith.constant 0 : index
    %c0_26 = arith.constant 0 : index
    %56 = vector.load %arg6[%c0_24, %c0_25, %c0_26] : memref<1x1x128xf32, #tpu.memory_space<vmem>>, vector<1x1x128xf32>
    tpu.vector_store %arg6[%c0_24, %c0_25, %c0_26], %55 {strides = array<i32>} : memref<1x1x128xf32, #tpu.memory_space<vmem>>, vector<1x1x128xf32>,
    %c0_i32_27 = arith.constant 0 : i32
    %57 = arith.cmpi eq, %arg1, %c0_i32_27 : i32
    %58 = arith.extui %57 : i1 to i32
    %c0_i32_28 = arith.constant 0 : i32
    %59 = arith.cmpi ne, %58, %c0_i32_28 : i32
    scf.if %59 {
      %c0_29 = arith.constant 0 : index
      %c0_30 = arith.constant 0 : index
      %c0_31 = arith.constant 0 : index
      %60 = vector.load %arg6[%c0_29, %c0_30, %c0_31] : memref<1x1x128xf32, #tpu.memory_space<vmem>>, vector<1x1x128xf32>
      %cst_32 = arith.constant dense<0.000000e+00> : vector<1x1xf32>
      %61 = vector.multi_reduction <add>, %60, %cst_32 [2] : vector<1x1x128xf32> to vector<1x1xf32>
      %62 = vector.shape_cast %61 : vector<1x1xf32> to vector<1x1x1xf32>
      %cst_33 = arith.constant 0.00178253115 : f32
      %63 = vector.broadcast %cst_33 : f32 to vector<1x1x1xf32>
      %64 = arith.mulf %62, %63 : vector<1x1x1xf32>
      %65 = vector.shape_cast %64 : vector<1x1x1xf32> to vector<1x1x1xf32>
      %66 = vector.broadcast %65 : vector<1x1x1xf32> to vector<1x1x128xf32>
      %c0_34 = arith.constant 0 : index
      %c0_35 = arith.constant 0 : index
      %c0_36 = arith.constant 0 : index
      %67 = vector.load %arg6[%c0_34, %c0_35, %c0_36] : memref<1x1x128xf32, #tpu.memory_space<vmem>>, vector<1x1x128xf32>
      tpu.vector_store %arg6[%c0_34, %c0_35, %c0_36], %66 {strides = array<i32>} : memref<1x1x128xf32, #tpu.memory_space<vmem>>, vector<1x1x128xf32>,
    } else {
    }
    return
  }
  func.func @transform_0(%arg0: i32, %arg1: i32) -> (i32, i32, i32) {
    %c0_i32 = arith.constant 0 : i32
    %c0_i32_0 = arith.constant 0 : i32
    return %arg0, %arg1, %c0_i32 : i32, i32, i32
  }
  func.func @transform_1(%arg0: i32, %arg1: i32) -> (i32, i32, i32) {
    %c0_i32 = arith.constant 0 : i32
    %c0_i32_0 = arith.constant 0 : i32
    return %arg0, %arg1, %c0_i32 : i32, i32, i32
  }
  func.func @transform_2(%arg0: i32, %arg1: i32) -> (i32, i32) {
    %c0_i32 = arith.constant 0 : i32
    %c0_i32_0 = arith.constant 0 : i32
    %c0_i32_1 = arith.constant 0 : i32
    return %c0_i32, %c0_i32_0 : i32, i32
  }
  func.func @transform_3(%arg0: i32, %arg1: i32) -> (i32, i32) {
    %c0_i32 = arith.constant 0 : i32
    %c0_i32_0 = arith.constant 0 : i32
    %c0_i32_1 = arith.constant 0 : i32
    return %c0_i32, %c0_i32_0 : i32, i32
  }
  func.func @transform_4(%arg0: i32, %arg1: i32) -> (i32, i32, i32) {
    %c0_i32 = arith.constant 0 : i32
    %c0_i32_0 = arith.constant 0 : i32
    %c0_i32_1 = arith.constant 0 : i32
    return %arg0, %c0_i32, %c0_i32_0 : i32, i32, i32
  }
}

</mosaic_0001>

<llo_original>
// kernel: loss_vae_reconstruction.1
$region0: #{loss_vae_reconstruction.1}
  #allocation0 [shape = 'u32[]', space=smem, size = 0x4, offset = 0x4, fixed_abs, tag = 'smem constant byte address 0x4 - core index']
  #allocation1 [shape = 'u32[144,128]{1,0:T(1,128)}', space=vmem, size = 0x12000, scoped, tag = 'internal scratch']
  %s0 = inlined_call_operand.vmem [shape: f32[2,24,64], index: 0, kind: input, shape index: {}]
  %s1 = inlined_call_operand.vmem [shape: f32[2,24,64], index: 1, kind: input, shape index: {}]
  %s2 = inlined_call_operand.vmem [shape: bf16[64,128], index: 2, kind: input, shape index: {}]
  %s3 = inlined_call_operand.vmem [shape: bf16[64,128], index: 3, kind: input, shape index: {}]
  %s4 = inlined_call_operand.vmem [shape: f32[2,1,128], index: 4, kind: output, shape index: {}]
  %s5 = sld [smem:[#allocation0]]
  $region57: #{loss_vae_reconstruction.1} parent=0
    _
  %s7 = ssub.s32 1, %s5
  %s8 = scalar_select 0, %s7, %s5
  loop: start=0, step=1, limit=4
  $region2: #{loss_vae_reconstruction.1} parent=0 // loop_pre_header
    _
  $region3: #{loss_vae_reconstruction.1} parent=0 // loop_header
    %s10 = sphi 0, %s14
    %p11 = scmp.ge.s32.totalorder %s10, 4
    %s17 = sphi 0, %s29
    %s18 = sphi 0, %s25
    %s19 = sphi 0, %s17
    %s20 = sphi 0, %s18
    %s21 = sphi 0, %s19
    %s22 = sphi 0, %s20
    %s34 = sphi 0, %s36
    %s37 = sphi 0, %s34
    %s38 = sphi 0, %s37
    %s54 = sphi 0, %s38
    %s62 = sphi 0, %s64
    %s65 = sphi 0, %s62
    %s66 = sphi 0, %s65
    %s82 = sphi 0, %s66
    %s86 = sphi 0, %s86
    %s88 = sphi 0, %s86
    %s89 = sphi 0, %s88
    %s103 = sphi 0, %s89
    %s107 = sphi 0, %s107
    %s109 = sphi 0, %s107
    %s110 = sphi 0, %s109
    %s124 = sphi 0, %s110
    %s130 = sphi 0, %s132
    %s133 = sphi 0, %s130
    %s134 = sphi 0, %s133
    %s150 = sphi 0, %s134
  $region4: #{loss_vae_reconstruction.1} parent=0 // loop_header_branch
    %13 = sbr.rel (%p11) target = $region8
  $region5: #{loss_vae_reconstruction.1} parent=0 // loop_body
    %s15 = ssub.s32 %s10, 1
    %s16 = ssub.s32 %s10, 2
    %s23 = sadd.s32 1, %s18
    %p24 = scmp.ge.s32.totalorder %s23, 1
    %s25 = scalar_select %p24, 0, %s23
    %s26 = sadd.s32 1, %s17
    %s27 = scalar_select %p24, %s26, %s17
    %p28 = scmp.ge.s32.totalorder %s27, 2
    %s29 = scalar_select %p28, 0, %s27
    %s30 = ssub.s32 %s17, %s29
    %s31 = ssub.s32 %s18, %s25
    %s32 = sor.u32 %s30, %s31
    %p33 = scmp.eq.s32.totalorder %s32, 0
    %s35 = sadd.s32 %s34, 1
    %s36 = scalar_select %p33, %s34, %s35
    %p39 = pneg %p33
    %p40 = scmp.eq.s32.totalorder %s10, 1
    %p41 = por %p39, %p40
    %p42 = scmp.ne.s32.totalorder %s34, %s37
    %p43 = scmp.eq.s32.totalorder %s10, 0
    %p44 = por %p42, %p43
    %p45 = scmp.ne.s32.totalorder %s34, %s37
    %p46 = scmp.eq.s32.totalorder %s15, 1
    %p47 = por %p45, %p46
    %p48 = scmp.ne.s32.totalorder %s37, %s38
    %p49 = scmp.eq.s32.totalorder %s15, 0
    %p50 = por %p48, %p49
    %p51 = scmp.ne.s32.totalorder %s37, %s38
    %p52 = scmp.eq.s32.totalorder %s16, 1
    %p53 = por %p51, %p52
    %p55 = scmp.ne.s32.totalorder %s38, %s54
    %p56 = scmp.eq.s32.totalorder %s16, 0
    %p57 = por %p55, %p56
    %s58 = ssub.s32 %s17, %s29
    %s59 = ssub.s32 %s18, %s25
    %s60 = sor.u32 %s58, %s59
    %p61 = scmp.eq.s32.totalorder %s60, 0
    %s63 = sadd.s32 %s62, 1
    %s64 = scalar_select %p61, %s62, %s63
    %p67 = pneg %p61
    %p68 = scmp.eq.s32.totalorder %s10, 1
    %p69 = por %p67, %p68
    %p70 = scmp.ne.s32.totalorder %s62, %s65
    %p71 = scmp.eq.s32.totalorder %s10, 0
    %p72 = por %p70, %p71
    %p73 = scmp.ne.s32.totalorder %s62, %s65
    %p74 = scmp.eq.s32.totalorder %s15, 1
    %p75 = por %p73, %p74
    %p76 = scmp.ne.s32.totalorder %s65, %s66
    %p77 = scmp.eq.s32.totalorder %s15, 0
    %p78 = por %p76, %p77
    %p79 = scmp.ne.s32.totalorder %s65, %s66
    %p80 = scmp.eq.s32.totalorder %s16, 1
    %p81 = por %p79, %p80
    %p83 = scmp.ne.s32.totalorder %s66, %s82
    %p84 = scmp.eq.s32.totalorder %s16, 0
    %p85 = por %p83, %p84
    %s87 = sadd.s32 %s86, 1
    %p90 = scmp.eq.s32.totalorder %s10, 1
    %p91 = scmp.ne.s32.totalorder %s86, %s88
    %p92 = scmp.eq.s32.totalorder %s10, 0
    %p93 = por %p91, %p92
    %p94 = scmp.ne.s32.totalorder %s86, %s88
    %p95 = scmp.eq.s32.totalorder %s15, 1
    %p96 = por %p94, %p95
    %p97 = scmp.ne.s32.totalorder %s88, %s89
    %p98 = scmp.eq.s32.totalorder %s15, 0
    %p99 = por %p97, %p98
    %p100 = scmp.ne.s32.totalorder %s88, %s89
    %p101 = scmp.eq.s32.totalorder %s16, 1
    %p102 = por %p100, %p101
    %p104 = scmp.ne.s32.totalorder %s89, %s103
    %p105 = scmp.eq.s32.totalorder %s16, 0
    %p106 = por %p104, %p105
    %s108 = sadd.s32 %s107, 1
    %p111 = scmp.eq.s32.totalorder %s10, 1
    %p112 = scmp.ne.s32.totalorder %s107, %s109
    %p113 = scmp.eq.s32.totalorder %s10, 0
    %p114 = por %p112, %p113
    %p115 = scmp.ne.s32.totalorder %s107, %s109
    %p116 = scmp.eq.s32.totalorder %s15, 1
    %p117 = por %p115, %p116
    %p118 = scmp.ne.s32.totalorder %s109, %s110
    %p119 = scmp.eq.s32.totalorder %s15, 0
    %p120 = por %p118, %p119
    %p121 = scmp.ne.s32.totalorder %s109, %s110
    %p122 = scmp.eq.s32.totalorder %s16, 1
    %p123 = por %p121, %p122
    %p125 = scmp.ne.s32.totalorder %s110, %s124
    %p126 = scmp.eq.s32.totalorder %s16, 0
    %p127 = por %p125, %p126
    %s128 = ssub.s32 %s17, %s29
    %p129 = scmp.eq.s32.totalorder %s128, 0
    %s131 = sadd.s32 %s130, 1
    %s132 = scalar_select %p129, %s130, %s131
    %p135 = pneg %p129
    %p136 = scmp.eq.s32.totalorder %s10, 1
    %p137 = por %p135, %p136
    %p138 = scmp.ne.s32.totalorder %s130, %s133
    %p139 = scmp.eq.s32.totalorder %s10, 0
    %p140 = por %p138, %p139
    %p141 = scmp.ne.s32.totalorder %s130, %s133
    %p142 = scmp.eq.s32.totalorder %s15, 1
    %p143 = por %p141, %p142
    %p144 = scmp.ne.s32.totalorder %s133, %s134
    %p145 = scmp.eq.s32.totalorder %s15, 0
    %p146 = por %p144, %p145
    %p147 = scmp.ne.s32.totalorder %s133, %s134
    %p148 = scmp.eq.s32.totalorder %s16, 1
    %p149 = por %p147, %p148
    %p151 = scmp.ne.s32.totalorder %s134, %s150
    %p152 = scmp.eq.s32.totalorder %s16, 0
    %p153 = por %p151, %p152
    %p154 = scmp.le.s32.totalorder 1, %s10
    %p155 = scmp.lt.s32.totalorder %s10, 3
    %p156 = pnand %p154, %p155
    %p157 = pneg %p156
    // Predicated region
    $region9: #{loss_vae_reconstruction.1} parent=5 // pred_check
      _
    $region10: #{loss_vae_reconstruction.1} parent=5 // pred_check_branch
      %159 = sbr.rel (%p156) target = $region12
    $region11: #{loss_vae_reconstruction.1} parent=5 // pred_region
      %s160 = ssub.s32 %s10, 1
      // Predicated region
      $region13: #{loss_vae_reconstruction.1} parent=11 // pred_check
        %p161 = pneg %p99
      $region14: #{loss_vae_reconstruction.1} parent=11 // pred_check_branch
        %163 = sbr.rel (%p161) target = $region16
      $region15: #{loss_vae_reconstruction.1} parent=11 // pred_region
        _
      $region16: #{loss_vae_reconstruction.1} parent=11 // pred_fallthru
        _
      // Predicated region
      $region17: #{loss_vae_reconstruction.1} parent=11 // pred_check
        %p164 = pneg %p120
      $region18: #{loss_vae_reconstruction.1} parent=11 // pred_check_branch
        %166 = sbr.rel (%p164) target = $region20
      $region19: #{loss_vae_reconstruction.1} parent=11 // pred_region
        _
      $region20: #{loss_vae_reconstruction.1} parent=11 // pred_fallthru
        _
    $region12: #{loss_vae_reconstruction.1} parent=5 // pred_fallthru
      _
    %p167 = scmp.lt.s32.totalorder %s10, 2
    // Predicated region
    $region21: #{loss_vae_reconstruction.1} parent=5 // pred_check
      %p168 = pneg %p167
    $region22: #{loss_vae_reconstruction.1} parent=5 // pred_check_branch
      %170 = sbr.rel (%p168) target = $region24
    $region23: #{loss_vae_reconstruction.1} parent=5 // pred_region
      // Predicated region
      $region25: #{loss_vae_reconstruction.1} parent=23 // pred_check
        %p171 = pneg %p44
      $region26: #{loss_vae_reconstruction.1} parent=23 // pred_check_branch
        %173 = sbr.rel (%p171) target = $region28
      $region27: #{loss_vae_reconstruction.1} parent=23 // pred_region
        %s174 = smul.u32 3, %s18
        %p175 = scmp.lt.s32.totalorder %s17, 1
        %s176 = scalar_select %p175, %s17, 1
        %p177 = scmp.lt.s32.totalorder %s174, 2
        %s178 = scalar_select %p177, %s174, 2
        %s179 = smul.addr %s176, 3
        %s180 = sadd.s32 %s178, %s179
        %s181 = smul.addr %s180, 8
        %s182 = scalar_lea.vmem %s0, %s181
        %s183 = smul.u32 3, %s18
      $region28: #{loss_vae_reconstruction.1} parent=23 // pred_fallthru
        _
      // Predicated region
      $region29: #{loss_vae_reconstruction.1} parent=23 // pred_check
        %p184 = pneg %p72
      $region30: #{loss_vae_reconstruction.1} parent=23 // pred_check_branch
        %186 = sbr.rel (%p184) target = $region32
      $region31: #{loss_vae_reconstruction.1} parent=23 // pred_region
        %s187 = smul.u32 3, %s18
        %p188 = scmp.lt.s32.totalorder %s17, 1
        %s189 = scalar_select %p188, %s17, 1
        %p190 = scmp.lt.s32.totalorder %s187, 2
        %s191 = scalar_select %p190, %s187, 2
        %s192 = smul.addr %s189, 3
        %s193 = sadd.s32 %s191, %s192
        %s194 = smul.addr %s193, 8
        %s195 = scalar_lea.vmem %s1, %s194
        %s196 = smul.u32 3, %s18
      $region32: #{loss_vae_reconstruction.1} parent=23 // pred_fallthru
        _
    $region24: #{loss_vae_reconstruction.1} parent=5 // pred_fallthru
      _
    %p197 = scmp.le.s32.totalorder 1, %s10
    %p198 = scmp.lt.s32.totalorder %s10, 3
    %p199 = pnand %p197, %p198
    %p200 = pneg %p199
    // Predicated region
    $region33: #{loss_vae_reconstruction.1} parent=5 // pred_check
      _
    $region34: #{loss_vae_reconstruction.1} parent=5 // pred_check_branch
      %202 = sbr.rel (%p199) target = $region36
    $region35: #{loss_vae_reconstruction.1} parent=5 // pred_region
      %s203 = ssub.s32 %s10, 1
      %s204 = smul.u32 3, %s20
      %p205 = scmp.lt.s32.totalorder %s19, 1
      %s206 = scalar_select %p205, %s19, 1
      %p207 = scmp.lt.s32.totalorder %s204, 2
      %s208 = scalar_select %p207, %s204, 2
      %s209 = smul.addr %s206, 3
      %s210 = sadd.s32 %s208, %s209
      %s211 = smul.addr %s210, 8
      %s212 = scalar_lea.vmem %s0, %s211
      %p213 = pneg %p50
      %p214 = pneg %p47
      %s215 = smul.u32 3, %s20
      %p216 = scmp.lt.s32.totalorder %s19, 1
      %s217 = scalar_select %p216, %s19, 1
      %p218 = scmp.lt.s32.totalorder %s215, 2
      %s219 = scalar_select %p218, %s215, 2
      %s220 = smul.addr %s217, 3
      %s221 = sadd.s32 %s219, %s220
      %s222 = smul.addr %s221, 8
      %s223 = scalar_lea.vmem %s1, %s222
      %p224 = pneg %p78
      %p225 = pneg %p75
      %p226 = pneg %p99
      %p227 = pneg %p96
      %p228 = pneg %p120
      %p229 = pneg %p117
      %p230 = pneg %p146
      %p231 = pneg %p143
      %p232 = scmp.lt.s32.totalorder %s19, 1
      %s233 = scalar_select %p232, %s19, 1
      %s234 = scalar_lea.vmem %s4, %s233
      %s235 = smul.u32 3, %s20
      %p236 = scmp.lt.s32.totalorder %s19, 1
      %s237 = scalar_select %p236, %s19, 1
      %p238 = scmp.lt.s32.totalorder %s235, 2
      %s239 = scalar_select %p238, %s235, 2
      %s240 = smul.addr %s237, 3
      %s241 = sadd.s32 %s239, %s240
      %s242 = smul.addr %s241, 8
      %s243 = scalar_lea.vmem %s0, %s242
      %s244 = smul.u32 3, %s20
      %s245 = smul.u32 3, %s20
      %p246 = scmp.lt.s32.totalorder %s19, 1
      %s247 = scalar_select %p246, %s19, 1
      %p248 = scmp.lt.s32.totalorder %s245, 2
      %s249 = scalar_select %p248, %s245, 2
      %s250 = smul.addr %s247, 3
      %s251 = sadd.s32 %s249, %s250
      %s252 = smul.addr %s251, 8
      %s253 = scalar_lea.vmem %s1, %s252
      %s254 = smul.u32 3, %s20
      %p255 = scmp.lt.s32.totalorder %s19, 1
      %s256 = scalar_select %p255, %s19, 1
      %s257 = scalar_lea.vmem %s4, %s256
      %p259 = scmp.eq.s32.totalorder %s20, 0
      // Predicated region
      $region37: #{loss_vae_reconstruction.1} parent=35 // pred_check
        %p260 = pneg %p259
      $region38: #{loss_vae_reconstruction.1} parent=35 // pred_check_branch
        %262 = sbr.rel (%p260) target = $region40
      $region39: #{loss_vae_reconstruction.1} parent=35 // pred_region
        %263 = vst [vmem:[%s257] sm:$0x1] 0.0
      $region40: #{loss_vae_reconstruction.1} parent=35 // pred_fallthru
        _
      %v264 = vld [vmem:[%s2] sm:$0xf]
      %v265 = vld [vmem:[%s2 + $0x4] sm:$0xf]
      %v266 = vld [vmem:[%s2 + $0x8] sm:$0xf]
      %v267 = vld [vmem:[%s2 + $0xc] sm:$0xf]
      %v268 = vld [vmem:[%s2 + $0x10] sm:$0xf]
      %v269 = vld [vmem:[%s2 + $0x14] sm:$0xf]
      %v270 = vld [vmem:[%s2 + $0x18] sm:$0xf]
      %v271 = vld [vmem:[%s2 + $0x1c] sm:$0xf]
      %v272 = vld [vmem:[%s3] sm:$0xf]
      %v273 = vld [vmem:[%s3 + $0x4] sm:$0xf]
      %v274 = vld [vmem:[%s3 + $0x8] sm:$0xf]
      %v275 = vld [vmem:[%s3 + $0xc] sm:$0xf]
      %v276 = vld [vmem:[%s3 + $0x10] sm:$0xf]
      %v277 = vld [vmem:[%s3 + $0x14] sm:$0xf]
      %v278 = vld [vmem:[%s3 + $0x18] sm:$0xf]
      %v279 = vld [vmem:[%s3 + $0x1c] sm:$0xf]
      %v280 = vld [vmem:[%s243] sm:$0xff]
      %v281 = vld [vmem:[%s243 + $0x8] sm:$0xff]
      %v282 = vld [vmem:[%s243 + $0x10] sm:$0xff]
      %v283 = vpack.c.bf16 %v281, %v280
      %v284 = vpack.c.bf16 %v282, %v282
      %v285 = vunpack.c.l.bf16 %v283
      %v286 = vunpack.c.h.bf16 %v283
      %v287 = vunpack.c.l.bf16 %v284
      %v288 = vsub.f32 %v280, %v285
      %v289 = vsub.f32 %v281, %v286
      %v290 = vsub.f32 %v282, %v287
      %v291 = vpack.c.bf16 %v289, %v288
      %v292 = vpack.c.bf16 %v290, %v290
      %v301 = vunpack.c.l.b16 %v264
      %v302 = vunpack.c.l.b16 %v265
      %v303 = vunpack.c.l.b16 %v266
      %v304 = vunpack.c.l.b16 %v267
      %v305 = vunpack.c.l.b16 %v268
      %v306 = vunpack.c.l.b16 %v269
      %v307 = vunpack.c.l.b16 %v270
      %v308 = vunpack.c.l.b16 %v271
      %v309 = vpack.c.b16 %v302, %v301
      %v310 = vpack.c.b16 %v304, %v303
      %v311 = vpack.c.b16 %v306, %v305
      %v312 = vpack.c.b16 %v308, %v307
      %vm317 = vcmask 523264
      %v319 = vsel %vm317, %v291, 0
      %v322 = vsel %vm317, %v292, 0
      %324 = vmatprep.subr.bf16.mxu0 0
      %325 = vmatpush1.bf16.msra.mxu0 0
      %326 = vmatprep.subr.bf16.mxu0 0
      %327 = vmatpush1.bf16.msra.mxu0 0
      %328 = vmatprep.subr.bf16.mxu0 0
      %329 = vmatpush1.bf16.msra.mxu0 0
      %330 = vmatprep.subr.bf16.mxu0 0
      %331 = vmatpush1.bf16.msra.mxu0 0
      %332 = vmatprep.subr.bf16.mxu0 0
      %333 = vmatpush1.bf16.msra.mxu0 %v312
      %334 = vmatprep.subr.bf16.mxu0 0
      %335 = vmatpush1.bf16.msra.mxu0 %v311
      %336 = vmatprep.subr.bf16.mxu0 0
      %337 = vmatpush1.bf16.msra.mxu0 %v310
      %338 = vmatprep.subr.bf16.mxu0 0
      %339 = vmatpush1.bf16.msra.mxu0 %v309
      %340 = vmatprep.subr.bf16.mxu0 0
      %341 = vmatpush2.bf16.msra.mxu0 0
      %342 = vmatprep.subr.bf16.mxu0 0
      %343 = vmatpush2.bf16.msra.mxu0 0
      %344 = vmatprep.subr.bf16.mxu0 0
      %345 = vmatpush2.bf16.msra.mxu0 0
      %346 = vmatprep.subr.bf16.mxu0 0
      %347 = vmatpush2.bf16.msra.mxu0 0
      %348 = vmatprep.subr.bf16.mxu0 0
      %349 = vmatpush2.bf16.msra.mxu0 0
      %350 = vmatprep.subr.bf16.mxu0 0
      %351 = vmatpush2.bf16.msra.mxu0 0
      %352 = vmatprep.subr.bf16.mxu0 0
      %353 = vmatpush2.bf16.msra.mxu0 0
      %354 = vmatprep.subr.bf16.mxu0 0
      %355 = vmatpush2.bf16.msra.mxu0 0
      %356 = vmatprep.mubr.bf16.mxu0 0
      %357 = vmatmul.mubr.bf16.gmra.mxu0 %v319
      %v358 = vpop.f32.mrf.mxu0
      %v359 = vadd.f32 0.0, %v358
      %v360 = vpop.f32.mrf.mxu0
      %v361 = vpop.f32.mrf.mxu0
      %v362 = vadd.f32 0.0, %v361
      %v363 = vpop.f32.mrf.mxu0
      %364 = vmatprep.mubr.bf16.mxu0 0
      %365 = vmatmul.mubr.bf16.gmra.mxu0 %v322
      %v366 = vpop.f32.mrf.mxu0
      %v367 = vadd.f32 0.0, %v366
      %v368 = vpop.f32.mrf.mxu0
      %v369 = vpop.f32.mrf.mxu0
      %v370 = vpop.f32.mrf.mxu0
      %371 = vdwg.mxu0
      %v373 = vsel %vm317, %v283, 0
      %v376 = vsel %vm317, %v284, 0
      %378 = vmatprep.subr.bf16.mxu0 0
      %379 = vmatpush1.bf16.msra.mxu0 0
      %380 = vmatprep.subr.bf16.mxu0 0
      %381 = vmatpush1.bf16.msra.mxu0 0
      %382 = vmatprep.subr.bf16.mxu0 0
      %383 = vmatpush1.bf16.msra.mxu0 0
      %384 = vmatprep.subr.bf16.mxu0 0
      %385 = vmatpush1.bf16.msra.mxu0 0
      %386 = vmatprep.subr.bf16.mxu0 0
      %387 = vmatpush1.bf16.msra.mxu0 %v312
      %388 = vmatprep.subr.bf16.mxu0 0
      %389 = vmatpush1.bf16.msra.mxu0 %v311
      %390 = vmatprep.subr.bf16.mxu0 0
      %391 = vmatpush1.bf16.msra.mxu0 %v310
      %392 = vmatprep.subr.bf16.mxu0 0
      %393 = vmatpush1.bf16.msra.mxu0 %v309
      %394 = vmatprep.subr.bf16.mxu0 0
      %395 = vmatpush2.bf16.msra.mxu0 0
      %396 = vmatprep.subr.bf16.mxu0 0
      %397 = vmatpush2.bf16.msra.mxu0 0
      %398 = vmatprep.subr.bf16.mxu0 0
      %399 = vmatpush2.bf16.msra.mxu0 0
      %400 = vmatprep.subr.bf16.mxu0 0
      %401 = vmatpush2.bf16.msra.mxu0 0
      %402 = vmatprep.subr.bf16.mxu0 0
      %403 = vmatpush2.bf16.msra.mxu0 0
      %404 = vmatprep.subr.bf16.mxu0 0
      %405 = vmatpush2.bf16.msra.mxu0 0
      %406 = vmatprep.subr.bf16.mxu0 0
      %407 = vmatpush2.bf16.msra.mxu0 0
      %408 = vmatprep.subr.bf16.mxu0 0
      %409 = vmatpush2.bf16.msra.mxu0 0
      %410 = vmatprep.mubr.bf16.mxu0 0
      %411 = vmatmul.mubr.bf16.gmra.mxu0 %v373
      %v412 = vpop.f32.mrf.mxu0
      %v413 = vadd.f32 %v359, %v412
      %v414 = vpop.f32.mrf.mxu0
      %v415 = vpop.f32.mrf.mxu0
      %v416 = vadd.f32 %v362, %v415
      %v417 = vpop.f32.mrf.mxu0
      %418 = vmatprep.mubr.bf16.mxu0 0
      %419 = vmatmul.mubr.bf16.gmra.mxu0 %v376
      %v420 = vpop.f32.mrf.mxu0
      %v421 = vadd.f32 %v367, %v420
      %v422 = vpop.f32.mrf.mxu0
      %v423 = vpop.f32.mrf.mxu0
      %v424 = vpop.f32.mrf.mxu0
      %425 = vdwg.mxu0
      %v434 = vunpack.c.l.b16 %v272
      %v435 = vunpack.c.l.b16 %v273
      %v436 = vunpack.c.l.b16 %v274
      %v437 = vunpack.c.l.b16 %v275
      %v438 = vunpack.c.l.b16 %v276
      %v439 = vunpack.c.l.b16 %v277
      %v440 = vunpack.c.l.b16 %v278
      %v441 = vunpack.c.l.b16 %v279
      %v442 = vpack.c.b16 %v435, %v434
      %v443 = vpack.c.b16 %v437, %v436
      %v444 = vpack.c.b16 %v439, %v438
      %v445 = vpack.c.b16 %v441, %v440
      %450 = vmatprep.subr.bf16.mxu0 0
      %451 = vmatpush1.bf16.msra.mxu0 0
      %452 = vmatprep.subr.bf16.mxu0 0
      %453 = vmatpush1.bf16.msra.mxu0 0
      %454 = vmatprep.subr.bf16.mxu0 0
      %455 = vmatpush1.bf16.msra.mxu0 0
      %456 = vmatprep.subr.bf16.mxu0 0
      %457 = vmatpush1.bf16.msra.mxu0 0
      %458 = vmatprep.subr.bf16.mxu0 0
      %459 = vmatpush1.bf16.msra.mxu0 %v445
      %460 = vmatprep.subr.bf16.mxu0 0
      %461 = vmatpush1.bf16.msra.mxu0 %v444
      %462 = vmatprep.subr.bf16.mxu0 0
      %463 = vmatpush1.bf16.msra.mxu0 %v443
      %464 = vmatprep.subr.bf16.mxu0 0
      %465 = vmatpush1.bf16.msra.mxu0 %v442
      %466 = vmatprep.subr.bf16.mxu0 0
      %467 = vmatpush2.bf16.msra.mxu0 0
      %468 = vmatprep.subr.bf16.mxu0 0
      %469 = vmatpush2.bf16.msra.mxu0 0
      %470 = vmatprep.subr.bf16.mxu0 0
      %471 = vmatpush2.bf16.msra.mxu0 0
      %472 = vmatprep.subr.bf16.mxu0 0
      %473 = vmatpush2.bf16.msra.mxu0 0
      %474 = vmatprep.subr.bf16.mxu0 0
      %475 = vmatpush2.bf16.msra.mxu0 0
      %476 = vmatprep.subr.bf16.mxu0 0
      %477 = vmatpush2.bf16.msra.mxu0 0
      %478 = vmatprep.subr.bf16.mxu0 0
      %479 = vmatpush2.bf16.msra.mxu0 0
      %480 = vmatprep.subr.bf16.mxu0 0
      %481 = vmatpush2.bf16.msra.mxu0 0
      %482 = vmatprep.mubr.bf16.mxu0 0
      %483 = vmatmul.mubr.bf16.gmra.mxu0 %v373
      %v484 = vpop.f32.mrf.mxu0
      %v485 = vadd.f32 0.0, %v484
      %v486 = vpop.f32.mrf.mxu0
      %v487 = vpop.f32.mrf.mxu0
      %v488 = vadd.f32 0.0, %v487
      %v489 = vpop.f32.mrf.mxu0
      %490 = vmatprep.mubr.bf16.mxu0 0
      %491 = vmatmul.mubr.bf16.gmra.mxu0 %v376
      %v492 = vpop.f32.mrf.mxu0
      %v493 = vadd.f32 0.0, %v492
      %v494 = vpop.f32.mrf.mxu0
      %v495 = vpop.f32.mrf.mxu0
      %v496 = vpop.f32.mrf.mxu0
      %497 = vdwg.mxu0
      %v498 = vadd.f32 %v413, %v485
      %v499 = vadd.f32 %v416, %v488
      %v500 = vadd.f32 %v421, %v493
      %501 = vrot.lane.b32.xlu0 %v498, 64
      %v502 = vpop.permute.xlu0 %501
      %503 = vrot.lane.b32.xlu0 %v499, 64
      %v504 = vpop.permute.xlu0 %503
      %505 = vrot.lane.b32.xlu0 %v500, 64
      %v506 = vpop.permute.xlu0 %505
      %v507 = vmul.f32 %v498, %v498
      %v508 = vmul.f32 %v499, %v499
      %v509 = vmul.f32 %v500, %v500
      %v510 = vmul.f32 %v502, %v502
      %v511 = vmul.f32 %v504, %v504
      %v512 = vmul.f32 %v506, %v506
      %v513 = vadd.f32 %v507, %v510
      %v514 = vadd.f32 %v508, %v511
      %v515 = vadd.f32 %v509, %v512
      %v516 = vadd.f32 %v513, 1e-18
      %v517 = vadd.f32 %v514, 1e-18
      %v518 = vadd.f32 %v515, 1e-18
      %v519 = vlog2.pop %v516
      %v520 = vmul.f32 %v519, 0.6931472
      %v521 = vlog2.pop %v517
      %v522 = vmul.f32 %v521, 0.6931472
      %v523 = vlog2.pop %v518
      %v524 = vmul.f32 %v523, 0.6931472
      %v525 = vmul.f32 %v520, -0.35
      %v526 = vmul.f32 %v522, -0.35
      %v527 = vmul.f32 %v524, -0.35
      %v528 = vmul.f32 %v525, 1.442695
      %v529 = vpow.pop %v528
      %v530 = vmul.f32 %v526, 1.442695
      %v531 = vpow.pop %v530
      %v532 = vmul.f32 %v527, 1.442695
      %v533 = vpow.pop %v532
      %v534 = vmul.f32 %v498, %v529
      %v535 = vmul.f32 %v499, %v531
      %v536 = vmul.f32 %v500, %v533
      %v537 = vld [vmem:[%s253] sm:$0xff]
      %v538 = vld [vmem:[%s253 + $0x8] sm:$0xff]
      %v539 = vld [vmem:[%s253 + $0x10] sm:$0xff]
      %v540 = vpack.c.bf16 %v538, %v537
      %v541 = vpack.c.bf16 %v539, %v539
      %v542 = vunpack.c.l.bf16 %v540
      %v543 = vunpack.c.h.bf16 %v540
      %v544 = vunpack.c.l.bf16 %v541
      %v545 = vsub.f32 %v537, %v542
      %v546 = vsub.f32 %v538, %v543
      %v547 = vsub.f32 %v539, %v544
      %v548 = vpack.c.bf16 %v546, %v545
      %v549 = vpack.c.bf16 %v547, %v547
      %v551 = vsel %vm317, %v548, 0
      %v554 = vsel %vm317, %v549, 0
      %556 = vmatprep.subr.bf16.mxu0 0
      %557 = vmatpush1.bf16.msra.mxu0 0
      %558 = vmatprep.subr.bf16.mxu0 0
      %559 = vmatpush1.bf16.msra.mxu0 0
      %560 = vmatprep.subr.bf16.mxu0 0
      %561 = vmatpush1.bf16.msra.mxu0 0
      %562 = vmatprep.subr.bf16.mxu0 0
      %563 = vmatpush1.bf16.msra.mxu0 0
      %564 = vmatprep.subr.bf16.mxu0 0
      %565 = vmatpush1.bf16.msra.mxu0 %v312
      %566 = vmatprep.subr.bf16.mxu0 0
      %567 = vmatpush1.bf16.msra.mxu0 %v311
      %568 = vmatprep.subr.bf16.mxu0 0
      %569 = vmatpush1.bf16.msra.mxu0 %v310
      %570 = vmatprep.subr.bf16.mxu0 0
      %571 = vmatpush1.bf16.msra.mxu0 %v309
      %572 = vmatprep.subr.bf16.mxu0 0
      %573 = vmatpush2.bf16.msra.mxu0 0
      %574 = vmatprep.subr.bf16.mxu0 0
      %575 = vmatpush2.bf16.msra.mxu0 0
      %576 = vmatprep.subr.bf16.mxu0 0
      %577 = vmatpush2.bf16.msra.mxu0 0
      %578 = vmatprep.subr.bf16.mxu0 0
      %579 = vmatpush2.bf16.msra.mxu0 0
      %580 = vmatprep.subr.bf16.mxu0 0
      %581 = vmatpush2.bf16.msra.mxu0 0
      %582 = vmatprep.subr.bf16.mxu0 0
      %583 = vmatpush2.bf16.msra.mxu0 0
      %584 = vmatprep.subr.bf16.mxu0 0
      %585 = vmatpush2.bf16.msra.mxu0 0
      %586 = vmatprep.subr.bf16.mxu0 0
      %587 = vmatpush2.bf16.msra.mxu0 0
      %588 = vmatprep.mubr.bf16.mxu0 0
      %589 = vmatmul.mubr.bf16.gmra.mxu0 %v551
      %v590 = vpop.f32.mrf.mxu0
      %v591 = vadd.f32 0.0, %v590
      %v592 = vpop.f32.mrf.mxu0
      %v593 = vpop.f32.mrf.mxu0
      %v594 = vadd.f32 0.0, %v593
      %v595 = vpop.f32.mrf.mxu0
      %596 = vmatprep.mubr.bf16.mxu0 0
      %597 = vmatmul.mubr.bf16.gmra.mxu0 %v554
      %v598 = vpop.f32.mrf.mxu0
      %v599 = vadd.f32 0.0, %v598
      %v600 = vpop.f32.mrf.mxu0
      %v601 = vpop.f32.mrf.mxu0
      %v602 = vpop.f32.mrf.mxu0
      %603 = vdwg.mxu0
      %v605 = vsel %vm317, %v540, 0
      %v608 = vsel %vm317, %v541, 0
      %610 = vmatprep.subr.bf16.mxu0 0
      %611 = vmatpush1.bf16.msra.mxu0 0
      %612 = vmatprep.subr.bf16.mxu0 0
      %613 = vmatpush1.bf16.msra.mxu0 0
      %614 = vmatprep.subr.bf16.mxu0 0
      %615 = vmatpush1.bf16.msra.mxu0 0
      %616 = vmatprep.subr.bf16.mxu0 0
      %617 = vmatpush1.bf16.msra.mxu0 0
      %618 = vmatprep.subr.bf16.mxu0 0
      %619 = vmatpush1.bf16.msra.mxu0 %v312
      %620 = vmatprep.subr.bf16.mxu0 0
      %621 = vmatpush1.bf16.msra.mxu0 %v311
      %622 = vmatprep.subr.bf16.mxu0 0
      %623 = vmatpush1.bf16.msra.mxu0 %v310
      %624 = vmatprep.subr.bf16.mxu0 0
      %625 = vmatpush1.bf16.msra.mxu0 %v309
      %626 = vmatprep.subr.bf16.mxu0 0
      %627 = vmatpush2.bf16.msra.mxu0 0
      %628 = vmatprep.subr.bf16.mxu0 0
      %629 = vmatpush2.bf16.msra.mxu0 0
      %630 = vmatprep.subr.bf16.mxu0 0
      %631 = vmatpush2.bf16.msra.mxu0 0
      %632 = vmatprep.subr.bf16.mxu0 0
      %633 = vmatpush2.bf16.msra.mxu0 0
      %634 = vmatprep.subr.bf16.mxu0 0
      %635 = vmatpush2.bf16.msra.mxu0 0
      %636 = vmatprep.subr.bf16.mxu0 0
      %637 = vmatpush2.bf16.msra.mxu0 0
      %638 = vmatprep.subr.bf16.mxu0 0
      %639 = vmatpush2.bf16.msra.mxu0 0
      %640 = vmatprep.subr.bf16.mxu0 0
      %641 = vmatpush2.bf16.msra.mxu0 0
      %642 = vmatprep.mubr.bf16.mxu0 0
      %643 = vmatmul.mubr.bf16.gmra.mxu0 %v605
      %v644 = vpop.f32.mrf.mxu0
      %v645 = vadd.f32 %v591, %v644
      %v646 = vpop.f32.mrf.mxu0
      %v647 = vpop.f32.mrf.mxu0
      %v648 = vadd.f32 %v594, %v647
      %v649 = vpop.f32.mrf.mxu0
      %650 = vmatprep.mubr.bf16.mxu0 0
      %651 = vmatmul.mubr.bf16.gmra.mxu0 %v608
      %v652 = vpop.f32.mrf.mxu0
      %v653 = vadd.f32 %v599, %v652
      %v654 = vpop.f32.mrf.mxu0
      %v655 = vpop.f32.mrf.mxu0
      %v656 = vpop.f32.mrf.mxu0
      %657 = vdwg.mxu0
      %658 = vmatprep.subr.bf16.mxu0 0
      %659 = vmatpush1.bf16.msra.mxu0 0
      %660 = vmatprep.subr.bf16.mxu0 0
      %661 = vmatpush1.bf16.msra.mxu0 0
      %662 = vmatprep.subr.bf16.mxu0 0
      %663 = vmatpush1.bf16.msra.mxu0 0
      %664 = vmatprep.subr.bf16.mxu0 0
      %665 = vmatpush1.bf16.msra.mxu0 0
      %666 = vmatprep.subr.bf16.mxu0 0
      %667 = vmatpush1.bf16.msra.mxu0 %v445
      %668 = vmatprep.subr.bf16.mxu0 0
      %669 = vmatpush1.bf16.msra.mxu0 %v444
      %670 = vmatprep.subr.bf16.mxu0 0
      %671 = vmatpush1.bf16.msra.mxu0 %v443
      %672 = vmatprep.subr.bf16.mxu0 0
      %673 = vmatpush1.bf16.msra.mxu0 %v442
      %674 = vmatprep.subr.bf16.mxu0 0
      %675 = vmatpush2.bf16.msra.mxu0 0
      %676 = vmatprep.subr.bf16.mxu0 0
      %677 = vmatpush2.bf16.msra.mxu0 0
      %678 = vmatprep.subr.bf16.mxu0 0
      %679 = vmatpush2.bf16.msra.mxu0 0
      %680 = vmatprep.subr.bf16.mxu0 0
      %681 = vmatpush2.bf16.msra.mxu0 0
      %682 = vmatprep.subr.bf16.mxu0 0
      %683 = vmatpush2.bf16.msra.mxu0 0
      %684 = vmatprep.subr.bf16.mxu0 0
      %685 = vmatpush2.bf16.msra.mxu0 0
      %686 = vmatprep.subr.bf16.mxu0 0
      %687 = vmatpush2.bf16.msra.mxu0 0
      %688 = vmatprep.subr.bf16.mxu0 0
      %689 = vmatpush2.bf16.msra.mxu0 0
      %690 = vmatprep.mubr.bf16.mxu0 0
      %691 = vmatmul.mubr.bf16.gmra.mxu0 %v605
      %v692 = vpop.f32.mrf.mxu0
      %v693 = vadd.f32 0.0, %v692
      %v694 = vpop.f32.mrf.mxu0
      %v695 = vpop.f32.mrf.mxu0
      %v696 = vadd.f32 0.0, %v695
      %v697 = vpop.f32.mrf.mxu0
      %698 = vmatprep.mubr.bf16.mxu0 0
      %699 = vmatmul.mubr.bf16.gmra.mxu0 %v608
      %v700 = vpop.f32.mrf.mxu0
      %v701 = vadd.f32 0.0, %v700
      %v702 = vpop.f32.mrf.mxu0
      %v703 = vpop.f32.mrf.mxu0
      %v704 = vpop.f32.mrf.mxu0
      %705 = vdwg.mxu0
      %v706 = vadd.f32 %v645, %v693
      %v707 = vadd.f32 %v648, %v696
      %v708 = vadd.f32 %v653, %v701
      %709 = vrot.lane.b32.xlu0 %v706, 64
      %v710 = vpop.permute.xlu0 %709
      %711 = vrot.lane.b32.xlu0 %v707, 64
      %v712 = vpop.permute.xlu0 %711
      %713 = vrot.lane.b32.xlu0 %v708, 64
      %v714 = vpop.permute.xlu0 %713
      %v715 = vmul.f32 %v706, %v706
      %v716 = vmul.f32 %v707, %v707
      %v717 = vmul.f32 %v708, %v708
      %v718 = vmul.f32 %v710, %v710
      %v719 = vmul.f32 %v712, %v712
      %v720 = vmul.f32 %v714, %v714
      %v721 = vadd.f32 %v715, %v718
      %v722 = vadd.f32 %v716, %v719
      %v723 = vadd.f32 %v717, %v720
      %v724 = vadd.f32 %v721, 1e-18
      %v725 = vadd.f32 %v722, 1e-18
      %v726 = vadd.f32 %v723, 1e-18
      %v727 = vlog2.pop %v724
      %v728 = vmul.f32 %v727, 0.6931472
      %v729 = vlog2.pop %v725
      %v730 = vmul.f32 %v729, 0.6931472
      %v731 = vlog2.pop %v726
      %v732 = vmul.f32 %v731, 0.6931472
      %v733 = vmul.f32 %v728, -0.35
      %v734 = vmul.f32 %v730, -0.35
      %v735 = vmul.f32 %v732, -0.35
      %v736 = vmul.f32 %v733, 1.442695
      %v737 = vpow.pop %v736
      %v738 = vmul.f32 %v734, 1.442695
      %v739 = vpow.pop %v738
      %v740 = vmul.f32 %v735, 1.442695
      %v741 = vpow.pop %v740
      %v742 = vmul.f32 %v706, %v737
      %v743 = vmul.f32 %v707, %v739
      %v744 = vmul.f32 %v708, %v741
      %v745 = vsub.f32 %v534, %v742
      %v746 = vsub.f32 %v535, %v743
      %v747 = vsub.f32 %v536, %v744
      %v748 = vmul.f32 %v745, %v745
      %v749 = vmul.f32 %v746, %v746
      %v750 = vmul.f32 %v747, %v747
      %v751 = vadd.f32 %v748, %v749
      %v752 = vadd.f32 %v751, %v750
      %v753 = vrot.slane %v752, 4
      %v754 = vadd.f32 %v752, %v753
      %v755 = vrot.slane %v754, 2
      %v756 = vadd.f32 %v754, %v755
      %v757 = vrot.slane %v756, 1
      %v758 = vadd.f32 %v756, %v757
      %v759 = vld [vmem:[%s257] sm:$0x1]
      %v760 = vadd.f32 %v759, %v758
      %761 = vst [vmem:[%s257] sm:$0x1] %v760
      // Predicated region
      $region41: #{loss_vae_reconstruction.1} parent=35 // pred_check
        %p762 = pneg %p259
      $region42: #{loss_vae_reconstruction.1} parent=35 // pred_check_branch
        %764 = sbr.rel (%p762) target = $region44
      $region43: #{loss_vae_reconstruction.1} parent=35 // pred_region
        %v765 = vld [vmem:[%s257] sm:$0x1]
        %vm766 = vcmask 1040384
        %v767 = vsel %vm766, %v765, 0.0
        %768 = vadd.xlane.f32.xlu0 %v767
        %v769 = vpop.xlane.xlu0 %768
        %v770 = vmul.f32 %v769, 0.0017825312
        %771 = vst [vmem:[%s257] sm:$0x1] %v770
      $region44: #{loss_vae_reconstruction.1} parent=35 // pred_fallthru
        _
      %p772 = scmp.lt.s32.totalorder %s19, 1
      %s773 = scalar_select %p772, %s19, 1
      %s774 = scalar_lea.vmem %s4, %s773
      // Predicated region
      $region45: #{loss_vae_reconstruction.1} parent=35 // pred_check
        %p775 = pneg %p143
      $region46: #{loss_vae_reconstruction.1} parent=35 // pred_check_branch
        %777 = sbr.rel (%p775) target = $region48
      $region47: #{loss_vae_reconstruction.1} parent=35 // pred_region
        _
      $region48: #{loss_vae_reconstruction.1} parent=35 // pred_fallthru
        _
    $region36: #{loss_vae_reconstruction.1} parent=5 // pred_fallthru
      _
    %p778 = scmp.le.s32.totalorder 2, %s10
    // Predicated region
    $region49: #{loss_vae_reconstruction.1} parent=5 // pred_check
      %p779 = pneg %p778
    $region50: #{loss_vae_reconstruction.1} parent=5 // pred_check_branch
      %781 = sbr.rel (%p779) target = $region52
    $region51: #{loss_vae_reconstruction.1} parent=5 // pred_region
      %s782 = ssub.s32 %s10, 2
      // Predicated region
      $region53: #{loss_vae_reconstruction.1} parent=51 // pred_check
        %p783 = pneg %p149
      $region54: #{loss_vae_reconstruction.1} parent=51 // pred_check_branch
        %785 = sbr.rel (%p783) target = $region56
      $region55: #{loss_vae_reconstruction.1} parent=51 // pred_region
        %p786 = scmp.lt.s32.totalorder %s21, 1
        %s787 = scalar_select %p786, %s21, 1
        %s788 = scalar_lea.vmem %s4, %s787
      $region56: #{loss_vae_reconstruction.1} parent=51 // pred_fallthru
        _
    $region52: #{loss_vae_reconstruction.1} parent=5 // pred_fallthru
      _
  $region6: #{loss_vae_reconstruction.1} parent=0 // loop_footer
    %s14 = sadd.s32 1, %s10
  $region7: #{loss_vae_reconstruction.1} parent=0 // loop_footer_branch
    %9 = sbr.rel target = $region3
  $region8: #{loss_vae_reconstruction.1} parent=0 // loop_exit
    _

</llo_original>
